<compile_context>
chip_gen: v5e
topology: v5e:2x2
jax: 0.10.0
libtpu: 0.0.40
codegen_flags: <defaults>
</compile_context>

<pallas_src>
import functools
import math

import jax
import jax.numpy as jnp
from jax.experimental import pallas as pl
from jax.experimental.pallas import tpu as pltpu

_LANES = 128
_SUBLANES = 8


def _round_up(x, m):
    return (x + m - 1) // m * m


def _detect_num_tensorcores():
    """Best-effort TensorCores-per-chip count; 1 (safe) if unknown."""
    try:
        info = pltpu.get_tpu_info()
        for attr in ("num_cores", "num_tensorcores", "tensor_cores_per_chip",
                     "cores_per_chip"):
            v = getattr(info, attr, None)
            if isinstance(v, int) and v > 0:
                return max(1, min(int(v), 2))
    except Exception:
        pass
    try:
        v = getattr(jax.devices()[0], "num_cores", None)
        if isinstance(v, int) and v > 0:
            return max(1, min(int(v), 2))
    except Exception:
        pass
    return 1


def _focal_dice_kernel(x_ref, t_ref, acc_ref, *,
                       m_total, tile_r, chunk_r, steps, num_blocks,
                       alpha, gamma, eps, binary_targets):
    c = pl.program_id(0)            # core axis ("parallel")
    s = pl.program_id(1)            # reduction axis ("arbitrary", acc resident)

    @pl.when(s == 0)
    def _init():
        acc_ref[...] = jnp.zeros_like(acc_ref)

    blk = c * steps + s
    blk_start = blk * tile_r                     # global start row of this block

    full_rows = m_total // _LANES                # rows fully covered by data
    rem_lanes = m_total % _LANES                 # valid lanes in boundary row
    n_chunks = tile_r // chunk_r

    is_full = blk_start + tile_r <= full_rows    # every element in-bounds
    is_real = blk < num_blocks                   # not a padded duplicate step

    def tile_body(masked):
        def chunk_fn(i, carry):
            fa, ia, pa, ta = carry
            start = pl.multiple_of(i * chunk_r, chunk_r)
            x = x_ref[pl.ds(start, chunk_r), :].astype(jnp.float32)
            t = t_ref[pl.ds(start, chunk_r), :].astype(jnp.float32)

            xc = jnp.clip(x, eps, 1.0 - eps)
            if binary_targets:
                # t in {0,1}: pt = xc if t==1 else (1-xc);  ce = -log(pt)
                pt = (1.0 - xc) + t * (2.0 * xc - 1.0)
                ce = -jnp.log(pt)
            else:
                lp = jnp.log(xc)
                l1p = jnp.log(1.0 - xc)
                ce = -(l1p + t * (lp - l1p))
                pt = jnp.exp(-ce)
            at = (1.0 - alpha) + (2.0 * alpha - 1.0) * t
            omp = 1.0 - pt
            if float(gamma) == 2.0:
                mod = omp * omp
            elif float(gamma) == 0.0:
                mod = jnp.ones_like(omp)
            elif float(gamma) == int(gamma):
                mod = omp ** int(gamma)
            else:
                mod = jnp.power(jnp.maximum(omp, 0.0), gamma)
            focal = at * ce * mod

            if masked:
                # Row-wise validity check (no rows*128+lanes int32 overflow).
                grow = (blk_start + start
                        + jax.lax.broadcasted_iota(jnp.int32, x.shape, 0))
                lane = jax.lax.broadcasted_iota(jnp.int32, x.shape, 1)
                valid = jnp.logical_or(
                    grow < full_rows,
                    jnp.logical_and(grow == full_rows, lane < rem_lanes))
                zero = jnp.zeros_like(x)
                focal = jnp.where(valid, focal, zero)
                xi = jnp.where(valid, x, zero)
                ti = jnp.where(valid, t, zero)
            else:
                xi, ti = x, t

            def red(v):                          # (chunk_r,128) -> (8,128)
                return v.reshape(chunk_r // _SUBLANES, _SUBLANES,
                                 _LANES).sum(axis=0)

            return (fa + red(focal), ia + red(xi * ti),
                    pa + red(xi), ta + red(ti))

        zeros = jnp.zeros((_SUBLANES, _LANES), jnp.float32)
        fa, ia, pa, ta = jax.lax.fori_loop(
            0, n_chunks, chunk_fn, (zeros, zeros, zeros, zeros))

        acc_ref[0, 0:8, :] += fa                 # sum focal
        acc_ref[0, 8:16, :] += ia                # sum pred*target
        acc_ref[0, 16:24, :] += pa               # sum pred
        acc_ref[0, 24:32, :] += ta               # sum target

    @pl.when(is_full)
    def _fast():
        tile_body(masked=False)

    @pl.when(jnp.logical_and(is_real, jnp.logical_not(is_full)))
    def _boundary():
        tile_body(masked=True)


@functools.partial(
    jax.jit,
    static_argnames=("beta", "gamma", "alpha", "eps", "smooth",
                     "tile_rows", "num_cores", "binary_targets"))
def focal_dice_loss(prediction, target, weights=None, *,
                    beta=1.0, gamma=2.0, alpha=0.25, eps=1e-7, smooth=1.0,
                    tile_rows=2048, num_cores=None, binary_targets=False):
    """FocalDiceLoss forward. prediction/target: same shape (probabilities)."""
    assert prediction.shape == target.shape
    m = int(prediction.size)

    if num_cores is None:
        num_cores = _detect_num_tensorcores()

    xf = prediction.reshape(-1)
    tf = target.reshape(-1)
    # zero-copy path when numel is a multiple of 8*128; otherwise pad once
    # (the padded tail is masked out inside the kernel's boundary-block path).
    if m % (_LANES * _SUBLANES) != 0:
        pad = _round_up(m, _LANES * _SUBLANES) - m
        xf = jnp.pad(xf, (0, pad))
        tf = jnp.pad(tf, (0, pad))
    r = xf.size // _LANES
    x2 = xf.reshape(r, _LANES)
    t2 = tf.reshape(r, _LANES)

    # block sizing: big lane-dense blocks (1 MiB/input at default), capped by
    # what the data actually needs; inner chunking bounds temporaries.
    tile_r = min(_round_up(tile_rows, _SUBLANES),
                 _round_up(pl.cdiv(r, num_cores), _SUBLANES))
    chunk_r = math.gcd(tile_r, 256)
    blocks = pl.cdiv(r, tile_r)                 # real row-blocks
    blocks_pad = _round_up(blocks, num_cores)   # balanced across cores
    steps = blocks_pad // num_cores
    last_blk = blocks - 1

    if blocks_pad > blocks:
        def in_map(c, s):
            return (jnp.minimum(c * steps + s, last_blk), 0)
    else:
        def in_map(c, s):
            return (c * steps + s, 0)

    kernel = functools.partial(
        _focal_dice_kernel, m_total=m, tile_r=tile_r, chunk_r=chunk_r,
        steps=steps, num_blocks=blocks, alpha=float(alpha),
        gamma=float(gamma), eps=float(eps),
        binary_targets=bool(binary_targets))

    parts = pl.pallas_call(
        kernel,
        out_shape=jax.ShapeDtypeStruct((num_cores, 4 * _SUBLANES, _LANES),
                                       jnp.float32),
        grid_spec=pltpu.PrefetchScalarGridSpec(
            num_scalar_prefetch=0,
            grid=(num_cores, steps),
            in_specs=[
                pl.BlockSpec((tile_r, _LANES), in_map),    # predictions
                pl.BlockSpec((tile_r, _LANES), in_map),    # targets
            ],
            out_specs=pl.BlockSpec((1, 4 * _SUBLANES, _LANES),
                                   lambda c, s: (c, 0, 0)),
        ),
        compiler_params=pltpu.CompilerParams(
            # TODO(synk): switch the core axis to pltpu.CORE_PARALLEL once
            # verified on v7x; "parallel" is the portable megacore hint.
            dimension_semantics=("parallel", "arbitrary"),
            vmem_limit_bytes=32 * 1024 * 1024),
    )(x2, t2)

    # tiny final reduction + scalar combination (pure JAX glue)
    sums = parts.reshape(num_cores, 4, _SUBLANES, _LANES).sum(axis=(0, 2, 3))
    focal_sum, inter_sum, pred_sum, targ_sum = sums[0], sums[1], sums[2], sums[3]

    dice = (2.0 * inter_sum + smooth) / (pred_sum + targ_sum + smooth)
    if weights is None:
        dc_loss = 1.0 - dice
    else:
        # PyTorch DiceLoss(weights): loss = sum_c w_c * (1 - dice); return 1 - loss.
        w_sum = jnp.sum(jnp.asarray(weights, jnp.float32))
        dc_loss = 1.0 - w_sum * (1.0 - dice)

    loss = (jnp.log(jnp.maximum(focal_sum, 1e-7))
            - beta * jnp.log(jnp.maximum(dc_loss, 1e-7)))
    return loss.astype(jnp.float32)


def _reference(pred, target, weights=None, *, beta=1.0, gamma=2.0, alpha=0.25,
               eps=1e-7, smooth=1.0):
    """Pure-JAX reference matching the PyTorch FocalDiceLoss forward."""
    p32 = pred.astype(jnp.float32)
    t32 = target.astype(jnp.float32)
    p = jnp.clip(p32, eps, 1.0 - eps)
    ce = -(t32 * jnp.log(p) + (1.0 - t32) * jnp.log(1.0 - p))
    pt = jnp.exp(-ce)
    at = alpha * t32 + (1.0 - alpha) * (1.0 - t32)
    fc = jnp.sum(at * ce * (1.0 - pt) ** gamma)
    i = p32.reshape(-1)
    t = t32.reshape(-1)
    dice = (2.0 * jnp.sum(i * t) + smooth) / (jnp.sum(i) + jnp.sum(t) + smooth)
    if weights is None:
        dc = 1.0 - dice
    else:
        dc = 1.0 - jnp.sum(jnp.asarray(weights, jnp.float32)) * (1.0 - dice)
    return jnp.log(jnp.maximum(fc, 1e-7)) - beta * jnp.log(jnp.maximum(dc, 1e-7))


if __name__ == "__main__":
    key = jax.random.PRNGKey(0)
    k1, k2, k3, k4 = jax.random.split(key, 4)

    # aligned shape (numel multiple of 1024 -> zero-copy, mask-free fast path)
    N, C, H, W = 2, 4, 16, 16
    logits = jax.random.normal(k1, (N, C, H, W), dtype=jnp.float32)
    prediction = jax.nn.sigmoid(logits)                       # probabilities
    target = (jax.random.uniform(k2, (N, C, H, W)) > 0.5).astype(jnp.float32)

    ref = _reference(prediction, target)

    out = jax.block_until_ready(focal_dice_loss(prediction, target))
    assert jnp.allclose(out, ref, rtol=1e-4, atol=1e-4), (out, ref)

    out_bin = jax.block_until_ready(
        focal_dice_loss(prediction, target, binary_targets=True))
    assert jnp.allclose(out_bin, ref, rtol=1e-4, atol=1e-4), (out_bin, ref)

    # ragged shape (exercises padding + masked boundary-block path)
    pred2 = jax.nn.sigmoid(jax.random.normal(k3, (2, 3, 15, 17), jnp.float32))
    targ2 = (jax.random.uniform(k4, (2, 3, 15, 17)) > 0.5).astype(jnp.float32)
    ref2 = _reference(pred2, targ2)
    out2 = jax.block_until_ready(focal_dice_loss(pred2, targ2))
    assert jnp.allclose(out2, ref2, rtol=1e-4, atol=1e-4), (out2, ref2)

    # weighted DiceLoss branch (wrapper-side scalar math only)
    w = jnp.array([0.2, 0.3, 0.5], jnp.float32)
    ref3 = _reference(prediction, target, w)
    out3 = jax.block_until_ready(focal_dice_loss(prediction, target, w))
    assert jnp.allclose(out3, ref3, rtol=1e-4, atol=1e-4), (out3, ref3)

    print("KERNEL_OK")
</pallas_src>

<mosaic_0001>
module attributes {stable_mosaic.version = 11 : i64} {
  func.func @_focal_dice_kernel(%arg0: i32, %arg1: i32, %arg2: memref<16x128xf32, #tpu.memory_space<vmem>>, %arg3: memref<16x128xf32, #tpu.memory_space<vmem>>, %arg4: memref<1x32x128xf32, #tpu.memory_space<vmem>>) attributes {dimension_semantics = [#tpu.dimension_semantics<parallel>, #tpu.dimension_semantics<arbitrary>], iteration_bounds = array<i64: 1, 1>, scalar_prefetch = 0 : i64, scratch_operands = 0 : i64, tpu.core_type = #tpu.core_type<tc>, window_params = [{transform_indices = @transform_0, window_bounds = array<i64: 16, 128>}, {transform_indices = @transform_1, window_bounds = array<i64: 16, 128>}, {transform_indices = @transform_2, window_bounds = array<i64: 1, 32, 128>}]} {
    %c0_i32 = arith.constant 0 : i32
    %0 = arith.cmpi eq, %arg1, %c0_i32 : i32
    %1 = arith.extui %0 : i1 to i32
    %c0_i32_0 = arith.constant 0 : i32
    %2 = arith.cmpi ne, %1, %c0_i32_0 : i32
    scf.if %2 {
      %cst = arith.constant 0.000000e+00 : f32
      %15 = vector.broadcast %cst : f32 to vector<1x32x128xf32>
      %c0 = arith.constant 0 : index
      %c0_6 = arith.constant 0 : index
      %c0_7 = arith.constant 0 : index
      %16 = vector.load %arg4[%c0, %c0_6, %c0_7] : memref<1x32x128xf32, #tpu.memory_space<vmem>>, vector<1x32x128xf32>
      tpu.vector_store %arg4[%c0, %c0_6, %c0_7], %15 {strides = array<i32>} : memref<1x32x128xf32, #tpu.memory_space<vmem>>, vector<1x32x128xf32>,
    } else {
    }
    %c1_i32 = arith.constant 1 : i32
    %3 = arith.muli %arg0, %c1_i32 : i32
    %4 = arith.addi %3, %arg1 : i32
    %c16_i32 = arith.constant 16 : i32
    %5 = arith.muli %4, %c16_i32 : i32
    %c16_i32_1 = arith.constant 16 : i32
    %6 = arith.addi %5, %c16_i32_1 : i32
    %c16_i32_2 = arith.constant 16 : i32
    %7 = arith.cmpi sle, %6, %c16_i32_2 : i32
    %c1_i32_3 = arith.constant 1 : i32
    %8 = arith.cmpi slt, %4, %c1_i32_3 : i32
    %9 = arith.extui %7 : i1 to i32
    %c0_i32_4 = arith.constant 0 : i32
    %10 = arith.cmpi ne, %9, %c0_i32_4 : i32
    scf.if %10 {
      %cst = arith.constant 0.000000e+00 : f32
      %15 = vector.broadcast %cst : f32 to vector<8x128xf32>
      %c0_i32_6 = arith.constant 0 : i32
      %c16_i32_7 = arith.constant 16 : i32
      %16 = arith.muli %c0_i32_6, %c16_i32_7 : i32
      %17 = tpu.assume_multiple %16, 16 : i32
      %18 = arith.index_cast %17 : i32 to index
      %c0 = arith.constant 0 : index
      %19 = vector.load %arg2[%18, %c0] : memref<16x128xf32, #tpu.memory_space<vmem>>, vector<16x128xf32>
      %20 = arith.index_cast %17 : i32 to index
      %c0_8 = arith.constant 0 : index
      %21 = vector.load %arg3[%20, %c0_8] : memref<16x128xf32, #tpu.memory_space<vmem>>, vector<16x128xf32>
      %cst_9 = arith.constant 1.000000e-07 : f32
      %cst_10 = arith.constant 0.99999988 : f32
      %22 = vector.broadcast %cst_9 : f32 to vector<16x128xf32>
      %23 = arith.maximumf %22, %19 : vector<16x128xf32>
      %24 = vector.broadcast %cst_10 : f32 to vector<16x128xf32>
      %25 = arith.minimumf %24, %23 : vector<16x128xf32>
      %26 = math.log %25 : vector<16x128xf32>
      %cst_11 = arith.constant 1.000000e+00 : f32
      %27 = vector.broadcast %cst_11 : f32 to vector<16x128xf32>
      %28 = arith.subf %27, %25 : vector<16x128xf32>
      %29 = math.log %28 : vector<16x128xf32>
      %30 = arith.subf %26, %29 : vector<16x128xf32>
      %31 = arith.mulf %21, %30 : vector<16x128xf32>
      %32 = arith.addf %29, %31 : vector<16x128xf32>
      %cst_12 = arith.constant 0.000000e+00 : f32
      %33 = vector.broadcast %cst_12 : f32 to vector<16x128xf32>
      %34 = arith.subf %33, %32 : vector<16x128xf32>
      %cst_13 = arith.constant 0.000000e+00 : f32
      %35 = vector.broadcast %cst_13 : f32 to vector<16x128xf32>
      %36 = arith.subf %35, %34 : vector<16x128xf32>
      %37 = math.exp %36 : vector<16x128xf32>
      %cst_14 = arith.constant -5.000000e-01 : f32
      %38 = vector.broadcast %cst_14 : f32 to vector<16x128xf32>
      %39 = arith.mulf %38, %21 : vector<16x128xf32>
      %cst_15 = arith.constant 7.500000e-01 : f32
      %40 = vector.broadcast %cst_15 : f32 to vector<16x128xf32>
      %41 = arith.addf %40, %39 : vector<16x128xf32>
      %cst_16 = arith.constant 1.000000e+00 : f32
      %42 = vector.broadcast %cst_16 : f32 to vector<16x128xf32>
      %43 = arith.subf %42, %37 : vector<16x128xf32>
      %44 = arith.mulf %43, %43 : vector<16x128xf32>
      %45 = arith.mulf %41, %34 : vector<16x128xf32>
      %46 = arith.mulf %45, %44 : vector<16x128xf32>
      %47 = vector.shape_cast %46 : vector<16x128xf32> to vector<2x8x128xf32>
      %cst_17 = arith.constant dense<0.000000e+00> : vector<8x128xf32>
      %48 = vector.multi_reduction <add>, %47, %cst_17 [0] : vector<2x8x128xf32> to vector<8x128xf32>
      %49 = arith.addf %15, %48 : vector<8x128xf32>
      %50 = arith.mulf %19, %21 : vector<16x128xf32>
      %51 = vector.shape_cast %50 : vector<16x128xf32> to vector<2x8x128xf32>
      %cst_18 = arith.constant dense<0.000000e+00> : vector<8x128xf32>
      %52 = vector.multi_reduction <add>, %51, %cst_18 [0] : vector<2x8x128xf32> to vector<8x128xf32>
      %53 = arith.addf %15, %52 : vector<8x128xf32>
      %54 = vector.shape_cast %19 : vector<16x128xf32> to vector<2x8x128xf32>
      %cst_19 = arith.constant dense<0.000000e+00> : vector<8x128xf32>
      %55 = vector.multi_reduction <add>, %54, %cst_19 [0] : vector<2x8x128xf32> to vector<8x128xf32>
      %56 = arith.addf %15, %55 : vector<8x128xf32>
      %57 = vector.shape_cast %21 : vector<16x128xf32> to vector<2x8x128xf32>
      %cst_20 = arith.constant dense<0.000000e+00> : vector<8x128xf32>
      %58 = vector.multi_reduction <add>, %57, %cst_20 [0] : vector<2x8x128xf32> to vector<8x128xf32>
      %59 = arith.addf %15, %58 : vector<8x128xf32>
      %c1_i32_21 = arith.constant 1 : i32
      %c0_22 = arith.constant 0 : index
      %c0_23 = arith.constant 0 : index
      %c0_24 = arith.constant 0 : index
      %60 = vector.load %arg4[%c0_22, %c0_23, %c0_24] : memref<1x32x128xf32, #tpu.memory_space<vmem>>, vector<1x8x128xf32>
      %61 = vector.shape_cast %60 : vector<1x8x128xf32> to vector<8x128xf32>
      %62 = arith.addf %61, %49 : vector<8x128xf32>
      %c0_25 = arith.constant 0 : index
      %c0_26 = arith.constant 0 : index
      %c0_27 = arith.constant 0 : index
      %63 = vector.load %arg4[%c0_25, %c0_26, %c0_27] : memref<1x32x128xf32, #tpu.memory_space<vmem>>, vector<1x8x128xf32>
      %64 = vector.shape_cast %63 : vector<1x8x128xf32> to vector<8x128xf32>
      %65 = vector.shape_cast %62 : vector<8x128xf32> to vector<1x8x128xf32>
      tpu.vector_store %arg4[%c0_25, %c0_26, %c0_27], %65 {strides = array<i32>} : memref<1x32x128xf32, #tpu.memory_space<vmem>>, vector<1x8x128xf32>,
      %c0_28 = arith.constant 0 : index
      %c8 = arith.constant 8 : index
      %c0_29 = arith.constant 0 : index
      %66 = vector.load %arg4[%c0_28, %c8, %c0_29] : memref<1x32x128xf32, #tpu.memory_space<vmem>>, vector<1x8x128xf32>
      %67 = vector.shape_cast %66 : vector<1x8x128xf32> to vector<8x128xf32>
      %68 = arith.addf %67, %53 : vector<8x128xf32>
      %c0_30 = arith.constant 0 : index
      %c8_31 = arith.constant 8 : index
      %c0_32 = arith.constant 0 : index
      %69 = vector.load %arg4[%c0_30, %c8_31, %c0_32] : memref<1x32x128xf32, #tpu.memory_space<vmem>>, vector<1x8x128xf32>
      %70 = vector.shape_cast %69 : vector<1x8x128xf32> to vector<8x128xf32>
      %71 = vector.shape_cast %68 : vector<8x128xf32> to vector<1x8x128xf32>
      tpu.vector_store %arg4[%c0_30, %c8_31, %c0_32], %71 {strides = array<i32>} : memref<1x32x128xf32, #tpu.memory_space<vmem>>, vector<1x8x128xf32>,
      %c0_33 = arith.constant 0 : index
      %c16 = arith.constant 16 : index
      %c0_34 = arith.constant 0 : index
      %72 = vector.load %arg4[%c0_33, %c16, %c0_34] : memref<1x32x128xf32, #tpu.memory_space<vmem>>, vector<1x8x128xf32>
      %73 = vector.shape_cast %72 : vector<1x8x128xf32> to vector<8x128xf32>
      %74 = arith.addf %73, %56 : vector<8x128xf32>
      %c0_35 = arith.constant 0 : index
      %c16_36 = arith.constant 16 : index
      %c0_37 = arith.constant 0 : index
      %75 = vector.load %arg4[%c0_35, %c16_36, %c0_37] : memref<1x32x128xf32, #tpu.memory_space<vmem>>, vector<1x8x128xf32>
      %76 = vector.shape_cast %75 : vector<1x8x128xf32> to vector<8x128xf32>
      %77 = vector.shape_cast %74 : vector<8x128xf32> to vector<1x8x128xf32>
      tpu.vector_store %arg4[%c0_35, %c16_36, %c0_37], %77 {strides = array<i32>} : memref<1x32x128xf32, #tpu.memory_space<vmem>>, vector<1x8x128xf32>,
      %c0_38 = arith.constant 0 : index
      %c24 = arith.constant 24 : index
      %c0_39 = arith.constant 0 : index
      %78 = vector.load %arg4[%c0_38, %c24, %c0_39] : memref<1x32x128xf32, #tpu.memory_space<vmem>>, vector<1x8x128xf32>
      %79 = vector.shape_cast %78 : vector<1x8x128xf32> to vector<8x128xf32>
      %80 = arith.addf %79, %59 : vector<8x128xf32>
      %c0_40 = arith.constant 0 : index
      %c24_41 = arith.constant 24 : index
      %c0_42 = arith.constant 0 : index
      %81 = vector.load %arg4[%c0_40, %c24_41, %c0_42] : memref<1x32x128xf32, #tpu.memory_space<vmem>>, vector<1x8x128xf32>
      %82 = vector.shape_cast %81 : vector<1x8x128xf32> to vector<8x128xf32>
      %83 = vector.shape_cast %80 : vector<8x128xf32> to vector<1x8x128xf32>
      tpu.vector_store %arg4[%c0_40, %c24_41, %c0_42], %83 {strides = array<i32>} : memref<1x32x128xf32, #tpu.memory_space<vmem>>, vector<1x8x128xf32>,
    } else {
    }
    %true = arith.constant true
    %11 = arith.xori %7, %true : i1
    %12 = arith.andi %8, %11 : i1
    %13 = arith.extui %12 : i1 to i32
    %c0_i32_5 = arith.constant 0 : i32
    %14 = arith.cmpi ne, %13, %c0_i32_5 : i32
    scf.if %14 {
      %cst = arith.constant 0.000000e+00 : f32
      %15 = vector.broadcast %cst : f32 to vector<8x128xf32>
      %c0_i32_6 = arith.constant 0 : i32
      %c16_i32_7 = arith.constant 16 : i32
      %16 = arith.muli %c0_i32_6, %c16_i32_7 : i32
      %17 = tpu.assume_multiple %16, 16 : i32
      %18 = arith.index_cast %17 : i32 to index
      %c0 = arith.constant 0 : index
      %19 = vector.load %arg2[%18, %c0] : memref<16x128xf32, #tpu.memory_space<vmem>>, vector<16x128xf32>
      %20 = arith.index_cast %17 : i32 to index
      %c0_8 = arith.constant 0 : index
      %21 = vector.load %arg3[%20, %c0_8] : memref<16x128xf32, #tpu.memory_space<vmem>>, vector<16x128xf32>
      %cst_9 = arith.constant 1.000000e-07 : f32
      %cst_10 = arith.constant 0.99999988 : f32
      %22 = vector.broadcast %cst_9 : f32 to vector<16x128xf32>
      %23 = arith.maximumf %22, %19 : vector<16x128xf32>
      %24 = vector.broadcast %cst_10 : f32 to vector<16x128xf32>
      %25 = arith.minimumf %24, %23 : vector<16x128xf32>
      %26 = math.log %25 : vector<16x128xf32>
      %cst_11 = arith.constant 1.000000e+00 : f32
      %27 = vector.broadcast %cst_11 : f32 to vector<16x128xf32>
      %28 = arith.subf %27, %25 : vector<16x128xf32>
      %29 = math.log %28 : vector<16x128xf32>
      %30 = arith.subf %26, %29 : vector<16x128xf32>
      %31 = arith.mulf %21, %30 : vector<16x128xf32>
      %32 = arith.addf %29, %31 : vector<16x128xf32>
      %cst_12 = arith.constant 0.000000e+00 : f32
      %33 = vector.broadcast %cst_12 : f32 to vector<16x128xf32>
      %34 = arith.subf %33, %32 : vector<16x128xf32>
      %cst_13 = arith.constant 0.000000e+00 : f32
      %35 = vector.broadcast %cst_13 : f32 to vector<16x128xf32>
      %36 = arith.subf %35, %34 : vector<16x128xf32>
      %37 = math.exp %36 : vector<16x128xf32>
      %cst_14 = arith.constant -5.000000e-01 : f32
      %38 = vector.broadcast %cst_14 : f32 to vector<16x128xf32>
      %39 = arith.mulf %38, %21 : vector<16x128xf32>
      %cst_15 = arith.constant 7.500000e-01 : f32
      %40 = vector.broadcast %cst_15 : f32 to vector<16x128xf32>
      %41 = arith.addf %40, %39 : vector<16x128xf32>
      %cst_16 = arith.constant 1.000000e+00 : f32
      %42 = vector.broadcast %cst_16 : f32 to vector<16x128xf32>
      %43 = arith.subf %42, %37 : vector<16x128xf32>
      %44 = arith.mulf %43, %43 : vector<16x128xf32>
      %45 = arith.mulf %41, %34 : vector<16x128xf32>
      %46 = arith.mulf %45, %44 : vector<16x128xf32>
      %47 = arith.addi %5, %17 : i32
      %48 = tpu.iota {dimensions = array<i32: 0>} : vector<16x128xi32>
      %49 = vector.broadcast %47 : i32 to vector<16x128xi32>
      %50 = arith.addi %49, %48 : vector<16x128xi32>
      %51 = tpu.iota {dimensions = array<i32: 1>} : vector<16x128xi32>
      %c16_i32_17 = arith.constant 16 : i32
      %52 = vector.broadcast %c16_i32_17 : i32 to vector<16x128xi32>
      %53 = arith.cmpi slt, %50, %52 : vector<16x128xi32>
      %c16_i32_18 = arith.constant 16 : i32
      %54 = vector.broadcast %c16_i32_18 : i32 to vector<16x128xi32>
      %55 = arith.cmpi eq, %50, %54 : vector<16x128xi32>
      %c0_i32_19 = arith.constant 0 : i32
      %56 = vector.broadcast %c0_i32_19 : i32 to vector<16x128xi32>
      %57 = arith.cmpi slt, %51, %56 : vector<16x128xi32>
      %58 = arith.andi %55, %57 : vector<16x128xi1>
      %59 = arith.ori %53, %58 : vector<16x128xi1>
      %cst_20 = arith.constant 0.000000e+00 : f32
      %60 = vector.broadcast %cst_20 : f32 to vector<16x128xf32>
      %61 = arith.select %59, %46, %60 : vector<16x128xi1>, vector<16x128xf32>
      %62 = arith.select %59, %19, %60 : vector<16x128xi1>, vector<16x128xf32>
      %63 = arith.select %59, %21, %60 : vector<16x128xi1>, vector<16x128xf32>
      %64 = vector.shape_cast %61 : vector<16x128xf32> to vector<2x8x128xf32>
      %cst_21 = arith.constant dense<0.000000e+00> : vector<8x128xf32>
      %65 = vector.multi_reduction <add>, %64, %cst_21 [0] : vector<2x8x128xf32> to vector<8x128xf32>
      %66 = arith.addf %15, %65 : vector<8x128xf32>
      %67 = arith.mulf %62, %63 : vector<16x128xf32>
      %68 = vector.shape_cast %67 : vector<16x128xf32> to vector<2x8x128xf32>
      %cst_22 = arith.constant dense<0.000000e+00> : vector<8x128xf32>
      %69 = vector.multi_reduction <add>, %68, %cst_22 [0] : vector<2x8x128xf32> to vector<8x128xf32>
      %70 = arith.addf %15, %69 : vector<8x128xf32>
      %71 = vector.shape_cast %62 : vector<16x128xf32> to vector<2x8x128xf32>
      %cst_23 = arith.constant dense<0.000000e+00> : vector<8x128xf32>
      %72 = vector.multi_reduction <add>, %71, %cst_23 [0] : vector<2x8x128xf32> to vector<8x128xf32>
      %73 = arith.addf %15, %72 : vector<8x128xf32>
      %74 = vector.shape_cast %63 : vector<16x128xf32> to vector<2x8x128xf32>
      %cst_24 = arith.constant dense<0.000000e+00> : vector<8x128xf32>
      %75 = vector.multi_reduction <add>, %74, %cst_24 [0] : vector<2x8x128xf32> to vector<8x128xf32>
      %76 = arith.addf %15, %75 : vector<8x128xf32>
      %c1_i32_25 = arith.constant 1 : i32
      %c0_26 = arith.constant 0 : index
      %c0_27 = arith.constant 0 : index
      %c0_28 = arith.constant 0 : index
      %77 = vector.load %arg4[%c0_26, %c0_27, %c0_28] : memref<1x32x128xf32, #tpu.memory_space<vmem>>, vector<1x8x128xf32>
      %78 = vector.shape_cast %77 : vector<1x8x128xf32> to vector<8x128xf32>
      %79 = arith.addf %78, %66 : vector<8x128xf32>
      %c0_29 = arith.constant 0 : index
      %c0_30 = arith.constant 0 : index
      %c0_31 = arith.constant 0 : index
      %80 = vector.load %arg4[%c0_29, %c0_30, %c0_31] : memref<1x32x128xf32, #tpu.memory_space<vmem>>, vector<1x8x128xf32>
      %81 = vector.shape_cast %80 : vector<1x8x128xf32> to vector<8x128xf32>
      %82 = vector.shape_cast %79 : vector<8x128xf32> to vector<1x8x128xf32>
      tpu.vector_store %arg4[%c0_29, %c0_30, %c0_31], %82 {strides = array<i32>} : memref<1x32x128xf32, #tpu.memory_space<vmem>>, vector<1x8x128xf32>,
      %c0_32 = arith.constant 0 : index
      %c8 = arith.constant 8 : index
      %c0_33 = arith.constant 0 : index
      %83 = vector.load %arg4[%c0_32, %c8, %c0_33] : memref<1x32x128xf32, #tpu.memory_space<vmem>>, vector<1x8x128xf32>
      %84 = vector.shape_cast %83 : vector<1x8x128xf32> to vector<8x128xf32>
      %85 = arith.addf %84, %70 : vector<8x128xf32>
      %c0_34 = arith.constant 0 : index
      %c8_35 = arith.constant 8 : index
      %c0_36 = arith.constant 0 : index
      %86 = vector.load %arg4[%c0_34, %c8_35, %c0_36] : memref<1x32x128xf32, #tpu.memory_space<vmem>>, vector<1x8x128xf32>
      %87 = vector.shape_cast %86 : vector<1x8x128xf32> to vector<8x128xf32>
      %88 = vector.shape_cast %85 : vector<8x128xf32> to vector<1x8x128xf32>
      tpu.vector_store %arg4[%c0_34, %c8_35, %c0_36], %88 {strides = array<i32>} : memref<1x32x128xf32, #tpu.memory_space<vmem>>, vector<1x8x128xf32>,
      %c0_37 = arith.constant 0 : index
      %c16 = arith.constant 16 : index
      %c0_38 = arith.constant 0 : index
      %89 = vector.load %arg4[%c0_37, %c16, %c0_38] : memref<1x32x128xf32, #tpu.memory_space<vmem>>, vector<1x8x128xf32>
      %90 = vector.shape_cast %89 : vector<1x8x128xf32> to vector<8x128xf32>
      %91 = arith.addf %90, %73 : vector<8x128xf32>
      %c0_39 = arith.constant 0 : index
      %c16_40 = arith.constant 16 : index
      %c0_41 = arith.constant 0 : index
      %92 = vector.load %arg4[%c0_39, %c16_40, %c0_41] : memref<1x32x128xf32, #tpu.memory_space<vmem>>, vector<1x8x128xf32>
      %93 = vector.shape_cast %92 : vector<1x8x128xf32> to vector<8x128xf32>
      %94 = vector.shape_cast %91 : vector<8x128xf32> to vector<1x8x128xf32>
      tpu.vector_store %arg4[%c0_39, %c16_40, %c0_41], %94 {strides = array<i32>} : memref<1x32x128xf32, #tpu.memory_space<vmem>>, vector<1x8x128xf32>,
      %c0_42 = arith.constant 0 : index
      %c24 = arith.constant 24 : index
      %c0_43 = arith.constant 0 : index
      %95 = vector.load %arg4[%c0_42, %c24, %c0_43] : memref<1x32x128xf32, #tpu.memory_space<vmem>>, vector<1x8x128xf32>
      %96 = vector.shape_cast %95 : vector<1x8x128xf32> to vector<8x128xf32>
      %97 = arith.addf %96, %76 : vector<8x128xf32>
      %c0_44 = arith.constant 0 : index
      %c24_45 = arith.constant 24 : index
      %c0_46 = arith.constant 0 : index
      %98 = vector.load %arg4[%c0_44, %c24_45, %c0_46] : memref<1x32x128xf32, #tpu.memory_space<vmem>>, vector<1x8x128xf32>
      %99 = vector.shape_cast %98 : vector<1x8x128xf32> to vector<8x128xf32>
      %100 = vector.shape_cast %97 : vector<8x128xf32> to vector<1x8x128xf32>
      tpu.vector_store %arg4[%c0_44, %c24_45, %c0_46], %100 {strides = array<i32>} : memref<1x32x128xf32, #tpu.memory_space<vmem>>, vector<1x8x128xf32>,
    } else {
    }
    return
  }
  func.func @transform_0(%arg0: i32, %arg1: i32) -> (i32, i32) {
    %c1_i32 = arith.constant 1 : i32
    %0 = arith.muli %arg0, %c1_i32 : i32
    %1 = arith.addi %0, %arg1 : i32
    %c0_i32 = arith.constant 0 : i32
    %c0_i32_0 = arith.constant 0 : i32
    return %1, %c0_i32 : i32, i32
  }
  func.func @transform_1(%arg0: i32, %arg1: i32) -> (i32, i32) {
    %c1_i32 = arith.constant 1 : i32
    %0 = arith.muli %arg0, %c1_i32 : i32
    %1 = arith.addi %0, %arg1 : i32
    %c0_i32 = arith.constant 0 : i32
    %c0_i32_0 = arith.constant 0 : i32
    return %1, %c0_i32 : i32, i32
  }
  func.func @transform_2(%arg0: i32, %arg1: i32) -> (i32, i32, i32) {
    %c0_i32 = arith.constant 0 : i32
    %c0_i32_0 = arith.constant 0 : i32
    %c0_i32_1 = arith.constant 0 : i32
    return %arg0, %c0_i32, %c0_i32_0 : i32, i32, i32
  }
}

</mosaic_0001>

<llo_original>
// kernel: focal_dice_loss.1
$region0: #{focal_dice_loss.1}
  #allocation0 [shape = 'u32[]', space=smem, size = 0x4, offset = 0x4, fixed_abs, tag = 'smem constant byte address 0x4 - core index']
  #allocation1 [shape = 'u32[72,128]{1,0:T(1,128)}', space=vmem, size = 0x9000, scoped, tag = 'internal scratch']
  %s0 = inlined_call_operand.vmem [shape: f32[16,128], index: 0, kind: input, shape index: {}]
  %s1 = inlined_call_operand.vmem [shape: f32[16,128], index: 1, kind: input, shape index: {}]
  %s2 = inlined_call_operand.vmem [shape: f32[1,32,128], index: 2, kind: output, shape index: {}]
  %s3 = sld [smem:[#allocation0]]
  $region30: #{focal_dice_loss.1} parent=0
    _
  %s5 = ssub.s32 1, %s3
  %s6 = scalar_select 0, %s5, %s3
  // Predicated region
  $region2: #{focal_dice_loss.1} parent=0 // pred_check
    _
  $region3: #{focal_dice_loss.1} parent=0 // pred_check_branch
    %8 = sbr.rel (0) target = $region5
  $region4: #{focal_dice_loss.1} parent=0 // pred_region
    %s9 = sadd.s32 0, 0
    %s10 = smul.u32 2, %s9
    %p11 = scmp.lt.s32.totalorder %s10, 1
    %s12 = scalar_select %p11, %s10, 1
    %s13 = smul.addr %s12, 8
    %s14 = scalar_lea.vmem %s0, %s13
    %s15 = sadd.s32 0, 0
    %s16 = smul.u32 2, %s15
  $region5: #{focal_dice_loss.1} parent=0 // pred_fallthru
    _
  // Predicated region
  $region6: #{focal_dice_loss.1} parent=0 // pred_check
    _
  $region7: #{focal_dice_loss.1} parent=0 // pred_check_branch
    %18 = sbr.rel (0) target = $region9
  $region8: #{focal_dice_loss.1} parent=0 // pred_region
    %s19 = sadd.s32 0, 0
    %s20 = smul.u32 2, %s19
    %p21 = scmp.lt.s32.totalorder %s20, 1
    %s22 = scalar_select %p21, %s20, 1
    %s23 = smul.addr %s22, 8
    %s24 = scalar_lea.vmem %s1, %s23
    %s25 = sadd.s32 0, 0
    %s26 = smul.u32 2, %s25
  $region9: #{focal_dice_loss.1} parent=0 // pred_fallthru
    _
  %s27 = sadd.s32 0, 0
  %s28 = smul.u32 2, %s27
  %p29 = scmp.lt.s32.totalorder %s28, 1
  %s30 = scalar_select %p29, %s28, 1
  %s31 = smul.addr %s30, 8
  %s32 = scalar_lea.vmem %s0, %s31
  %s33 = sadd.s32 0, 0
  %s34 = smul.u32 2, %s33
  %p35 = scmp.lt.s32.totalorder %s34, 1
  %s36 = scalar_select %p35, %s34, 1
  %s37 = smul.addr %s36, 8
  %s38 = scalar_lea.vmem %s1, %s37
  %s39 = sadd.s32 0, 0
  %s40 = smul.u32 2, %s39
  %p41 = scmp.lt.s32.totalorder %s40, 1
  %s42 = scalar_select %p41, %s40, 1
  %s43 = smul.addr %s42, 8
  %s44 = scalar_lea.vmem %s0, %s43
  %s45 = sadd.s32 0, 0
  %s46 = smul.u32 2, %s45
  %s47 = sadd.s32 0, 0
  %s48 = smul.u32 2, %s47
  %p49 = scmp.lt.s32.totalorder %s48, 1
  %s50 = scalar_select %p49, %s48, 1
  %s51 = smul.addr %s50, 8
  %s52 = scalar_lea.vmem %s1, %s51
  %s53 = sadd.s32 0, 0
  %s54 = smul.u32 2, %s53
  %p55 = scmp.eq.s32.totalorder 0, 0
  // Predicated region
  $region10: #{focal_dice_loss.1} parent=0 // pred_check
    %p56 = pneg %p55
  $region11: #{focal_dice_loss.1} parent=0 // pred_check_branch
    %58 = sbr.rel (%p56) target = $region13
  $region12: #{focal_dice_loss.1} parent=0 // pred_region
    %59 = vst [vmem:[%s2] sm:$0xff] 0.0
    %60 = vst [vmem:[%s2 + $0x8] sm:$0xff] 0.0
    %61 = vst [vmem:[%s2 + $0x10] sm:$0xff] 0.0
    %62 = vst [vmem:[%s2 + $0x18] sm:$0xff] 0.0
  $region13: #{focal_dice_loss.1} parent=0 // pred_fallthru
    _
  %s63 = sadd.s32 0, 0
  %s64 = smul.u32 %s63, 16
  %s65 = sadd.s32 %s64, 16
  %p66 = scmp.le.s32.totalorder %s65, 16
  %p67 = scmp.lt.s32.totalorder %s63, 1
  // Predicated region
  $region14: #{focal_dice_loss.1} parent=0 // pred_check
    %p68 = pneg %p66
  $region15: #{focal_dice_loss.1} parent=0 // pred_check_branch
    %70 = sbr.rel (%p68) target = $region17
  $region16: #{focal_dice_loss.1} parent=0 // pred_region
    %v71 = vld [vmem:[%s44] sm:$0xff]
    %v72 = vld [vmem:[%s44 + $0x8] sm:$0xff]
    %v73 = vld [vmem:[%s52] sm:$0xff]
    %v74 = vld [vmem:[%s52 + $0x8] sm:$0xff]
    %v75 = vmax.f32 %v71, 1e-07
    %v76 = vmax.f32 %v72, 1e-07
    %v77 = vmin.f32 %v75, 0.9999999
    %v78 = vmin.f32 %v76, 0.9999999
    %v79 = vlog2.pop %v77
    %v80 = vmul.f32 %v79, 0.6931472
    %v81 = vlog2.pop %v78
    %v82 = vmul.f32 %v81, 0.6931472
    %v83 = vsub.f32 1.0, %v77
    %v84 = vsub.f32 1.0, %v78
    %v85 = vlog2.pop %v83
    %v86 = vmul.f32 %v85, 0.6931472
    %v87 = vlog2.pop %v84
    %v88 = vmul.f32 %v87, 0.6931472
    %v89 = vsub.f32 %v80, %v86
    %v90 = vsub.f32 %v82, %v88
    %v91 = vmul.f32 %v73, %v89
    %v92 = vmul.f32 %v74, %v90
    %v93 = vadd.f32 %v86, %v91
    %v94 = vadd.f32 %v88, %v92
    %v95 = vsub.f32 0.0, %v93
    %v96 = vsub.f32 0.0, %v94
    %v97 = vsub.f32 0.0, %v95
    %v98 = vsub.f32 0.0, %v96
    %v99 = vmul.f32 %v97, 1.442695
    %v100 = vpow.pop %v99
    %v101 = vmul.f32 %v98, 1.442695
    %v102 = vpow.pop %v101
    %v103 = vmul.f32 %v73, -0.5
    %v104 = vmul.f32 %v74, -0.5
    %v105 = vadd.f32 %v103, 0.75
    %v106 = vadd.f32 %v104, 0.75
    %v107 = vsub.f32 1.0, %v100
    %v108 = vsub.f32 1.0, %v102
    %v109 = vmul.f32 %v107, %v107
    %v110 = vmul.f32 %v108, %v108
    %v111 = vmul.f32 %v105, %v95
    %v112 = vmul.f32 %v106, %v96
    %v113 = vmul.f32 %v111, %v109
    %v114 = vmul.f32 %v112, %v110
    %v115 = vadd.f32 %v113, %v114
    %v116 = vadd.f32 %v115, 0.0
    %v117 = vmul.f32 %v71, %v73
    %v118 = vmul.f32 %v72, %v74
    %v119 = vadd.f32 %v117, %v118
    %v120 = vadd.f32 %v119, 0.0
    %v121 = vadd.f32 %v71, %v72
    %v122 = vadd.f32 %v121, 0.0
    %v123 = vadd.f32 %v73, %v74
    %v124 = vadd.f32 %v123, 0.0
    %v125 = vld [vmem:[%s2] sm:$0xff]
    %v126 = vadd.f32 %v125, %v116
    %127 = vst [vmem:[%s2] sm:$0xff] %v126
    %v128 = vld [vmem:[%s2 + $0x8] sm:$0xff]
    %v129 = vadd.f32 %v128, %v120
    %130 = vst [vmem:[%s2 + $0x8] sm:$0xff] %v129
    %v131 = vld [vmem:[%s2 + $0x10] sm:$0xff]
    %v132 = vadd.f32 %v131, %v122
    %133 = vst [vmem:[%s2 + $0x10] sm:$0xff] %v132
    %v134 = vld [vmem:[%s2 + $0x18] sm:$0xff]
    %v135 = vadd.f32 %v134, %v124
    %136 = vst [vmem:[%s2 + $0x18] sm:$0xff] %v135
  $region17: #{focal_dice_loss.1} parent=0 // pred_fallthru
    _
  %p137 = scmp.gt.s32.totalorder %s65, 16
  %p138 = pnand %p67, %p137
  %p139 = pneg %p138
  // Predicated region
  $region18: #{focal_dice_loss.1} parent=0 // pred_check
    _
  $region19: #{focal_dice_loss.1} parent=0 // pred_check_branch
    %141 = sbr.rel (%p138) target = $region21
  $region20: #{focal_dice_loss.1} parent=0 // pred_region
    %v142 = vld [vmem:[%s44] sm:$0xff]
    %v143 = vld [vmem:[%s44 + $0x8] sm:$0xff]
    %v144 = vld [vmem:[%s52] sm:$0xff]
    %v145 = vld [vmem:[%s52 + $0x8] sm:$0xff]
    %v146 = vmax.f32 %v142, 1e-07
    %v147 = vmax.f32 %v143, 1e-07
    %v148 = vmin.f32 %v146, 0.9999999
    %v149 = vmin.f32 %v147, 0.9999999
    %v150 = vlog2.pop %v148
    %v151 = vmul.f32 %v150, 0.6931472
    %v152 = vlog2.pop %v149
    %v153 = vmul.f32 %v152, 0.6931472
    %v154 = vsub.f32 1.0, %v148
    %v155 = vsub.f32 1.0, %v149
    %v156 = vlog2.pop %v154
    %v157 = vmul.f32 %v156, 0.6931472
    %v158 = vlog2.pop %v155
    %v159 = vmul.f32 %v158, 0.6931472
    %v160 = vsub.f32 %v151, %v157
    %v161 = vsub.f32 %v153, %v159
    %v162 = vmul.f32 %v144, %v160
    %v163 = vmul.f32 %v145, %v161
    %v164 = vadd.f32 %v157, %v162
    %v165 = vadd.f32 %v159, %v163
    %v166 = vsub.f32 0.0, %v164
    %v167 = vsub.f32 0.0, %v165
    %v168 = vsub.f32 0.0, %v166
    %v169 = vsub.f32 0.0, %v167
    %v170 = vmul.f32 %v168, 1.442695
    %v171 = vpow.pop %v170
    %v172 = vmul.f32 %v169, 1.442695
    %v173 = vpow.pop %v172
    %v174 = vmul.f32 %v144, -0.5
    %v175 = vmul.f32 %v145, -0.5
    %v176 = vadd.f32 %v174, 0.75
    %v177 = vadd.f32 %v175, 0.75
    %v178 = vsub.f32 1.0, %v171
    %v179 = vsub.f32 1.0, %v173
    %v180 = vmul.f32 %v178, %v178
    %v181 = vmul.f32 %v179, %v179
    %v182 = vmul.f32 %v176, %v166
    %v183 = vmul.f32 %v177, %v167
    %v184 = vmul.f32 %v182, %v180
    %v185 = vmul.f32 %v183, %v181
    %s186 = sadd.s32 %s64, 0
    %v187 = vlaneseq
    %v188 = vshrl.u32 %v187, 7
    %v189 = vadd.s32 %v188, 8
    %v190 = vstv %s186
    %v191 = vadd.s32 %v190, %v188
    %v192 = vadd.s32 %v190, %v189
    %v193 = vlaneseq
    %v194 = vand.u32 %v193, 127
    %vm195 = vcmp.lt.s32.totalorder %v191, 16
    %vm196 = vcmp.lt.s32.totalorder %v192, 16
    %vm197 = vcmp.eq.s32.totalorder %v191, 16
    %vm198 = vcmp.eq.s32.totalorder %v192, 16
    %vm199 = vcmp.lt.s32.totalorder %v194, 0
    %vm200 = vmand %vm197, %vm199
    %vm201 = vmand %vm198, %vm199
    %vm202 = vmor %vm195, %vm200
    %vm203 = vmor %vm196, %vm201
    %v204 = vsel %vm202, %v184, 0.0
    %v205 = vsel %vm203, %v185, 0.0
    %v206 = vsel %vm202, %v142, 0.0
    %v207 = vsel %vm203, %v143, 0.0
    %v208 = vsel %vm202, %v144, 0.0
    %v209 = vsel %vm203, %v145, 0.0
    %v210 = vadd.f32 %v204, %v205
    %v211 = vadd.f32 %v210, 0.0
    %v212 = vmul.f32 %v206, %v208
    %v213 = vmul.f32 %v207, %v209
    %v214 = vadd.f32 %v212, %v213
    %v215 = vadd.f32 %v214, 0.0
    %v216 = vadd.f32 %v206, %v207
    %v217 = vadd.f32 %v216, 0.0
    %v218 = vadd.f32 %v208, %v209
    %v219 = vadd.f32 %v218, 0.0
    %v220 = vld [vmem:[%s2] sm:$0xff]
    %v221 = vadd.f32 %v220, %v211
    %222 = vst [vmem:[%s2] sm:$0xff] %v221
    %v223 = vld [vmem:[%s2 + $0x8] sm:$0xff]
    %v224 = vadd.f32 %v223, %v215
    %225 = vst [vmem:[%s2 + $0x8] sm:$0xff] %v224
    %v226 = vld [vmem:[%s2 + $0x10] sm:$0xff]
    %v227 = vadd.f32 %v226, %v217
    %228 = vst [vmem:[%s2 + $0x10] sm:$0xff] %v227
    %v229 = vld [vmem:[%s2 + $0x18] sm:$0xff]
    %v230 = vadd.f32 %v229, %v219
    %231 = vst [vmem:[%s2 + $0x18] sm:$0xff] %v230
  $region21: #{focal_dice_loss.1} parent=0 // pred_fallthru
    _
  // Predicated region
  $region22: #{focal_dice_loss.1} parent=0 // pred_check
    _
  $region23: #{focal_dice_loss.1} parent=0 // pred_check_branch
    %233 = sbr.rel (0) target = $region25
  $region24: #{focal_dice_loss.1} parent=0 // pred_region
    _
  $region25: #{focal_dice_loss.1} parent=0 // pred_fallthru
    _
  // Predicated region
  $region26: #{focal_dice_loss.1} parent=0 // pred_check
    _
  $region27: #{focal_dice_loss.1} parent=0 // pred_check_branch
    %235 = sbr.rel (0) target = $region29
  $region28: #{focal_dice_loss.1} parent=0 // pred_region
    _
  $region29: #{focal_dice_loss.1} parent=0 // pred_fallthru
    _

</llo_original>
